<compile_context>
chip_gen: v5e
topology: v5e:2x2
jax: 0.10.0
libtpu: 0.0.40
codegen_flags: <defaults>
</compile_context>

<pallas_src>
import functools
import math

import jax
import jax.numpy as jnp
from jax.experimental import pallas as pl
from jax.experimental.pallas import tpu as pltpu


def _attn_pool_kernel(x_ref, lens_ref, wqkv_ref, bqkv_ref, wo_ref, bo_ref,
                      out_ref, *, compute_dtype):
    TB, S, D_in = x_ref.shape
    E = wo_ref.shape[1]

    # [TB, S, D_in] -> [TB*S, D_in] slab (layout-free reshape: last dim unchanged)
    x = x_ref[...].reshape(TB * S, D_in).astype(compute_dtype)

    # Single fused QKV projection.  The outer Linear layers are folded into the
    # MHA in_proj and the 1/sqrt(E) scale is folded into the Q columns (wrapper).
    qkv = jnp.dot(x, wqkv_ref[...].astype(compute_dtype),
                  preferred_element_type=jnp.float32) + bqkv_ref[...]    # [TB*S, 3E]
    q = qkv[:, :E].reshape(TB, S, E)
    k = qkv[:, E:2 * E].reshape(TB, S, E)
    v = qkv[:, 2 * E:].reshape(TB, S, E)

    # Batched scores; contraction over the feature dim (no explicit K^T).
    scores = jnp.einsum('bqd,bkd->bqk',
                        q.astype(compute_dtype), k.astype(compute_dtype),
                        preferred_element_type=jnp.float32)              # [TB, S, S]

    lens = lens_ref[...].reshape(TB, 1, 1)                               # int32
    key_iota = jax.lax.broadcasted_iota(jnp.int32, (TB, 1, S), 2)
    key_mask = key_iota < lens                                           # [TB, 1, S]
    scores = jnp.where(key_mask, scores, -1e30)

    # Softmax (f32), reciprocal routed to the EUP.
    m = jnp.max(scores, axis=-1, keepdims=True)
    p = jnp.exp(scores - m)
    denom = jnp.sum(p, axis=-1, keepdims=True)
    attn = p * pl.reciprocal(denom, approx=True)

    ao = jnp.einsum('bqk,bkd->bqd',
                    attn.astype(compute_dtype), v.astype(compute_dtype),
                    preferred_element_type=jnp.float32)                  # [TB, S, E]

    # MHA out_proj on the flattened slab.
    o = jnp.dot(ao.reshape(TB * S, E).astype(compute_dtype),
                wo_ref[...].astype(compute_dtype),
                preferred_element_type=jnp.float32) + bo_ref[...]
    o = o.reshape(TB, S, E)

    # MaxPool2d(kernel_size=(L, 1)): max over the valid rows only.
    row_iota = jax.lax.broadcasted_iota(jnp.int32, (TB, S, 1), 1)
    row_mask = row_iota < lens                                           # [TB, S, 1]
    o = jnp.where(row_mask, o, -1e30)
    out_ref[...] = jnp.max(o, axis=1).astype(out_ref.dtype)              # [TB, E]


def _fuse_params(params, embed_dim):
    """Exact fusion of (q/k/v Linear) o (MHA in_proj) + 1/sqrt(E) scale on Q."""
    scale = 1.0 / math.sqrt(embed_dim)
    wq = (params["wq1"] @ params["wq2"]) * scale
    bq = (params["bq1"] @ params["wq2"] + params["bq2"]) * scale
    wk = params["wk1"] @ params["wk2"]
    bk = params["bk1"] @ params["wk2"] + params["bk2"]
    wv = params["wv1"] @ params["wv2"]
    bv = params["bv1"] @ params["wv2"] + params["bv2"]
    wqkv = jnp.concatenate([wq, wk, wv], axis=1)      # [D_in, 3E]
    bqkv = jnp.concatenate([bq, bk, bv], axis=1)      # [1, 3E]
    return wqkv, bqkv, params["wo"], params["bo"]


def multihead_self_attention_pallas(x, lens, params, *, batch_tile=8,
                                    use_bf16_matmul=False):
    """x: [B, S, D_in] padded features, lens: [B] valid lengths -> [B, E]."""
    B, S, D_in = x.shape
    E = params["wo"].shape[1]
    wqkv, bqkv, wo, bo = _fuse_params(params, E)

    TB = batch_tile
    assert TB % 8 == 0, "batch tile must be a multiple of 8 (sublane alignment)"
    B_pad = pl.cdiv(B, TB) * TB
    if B_pad != B:
        # Pad with dummy samples of length 1 (finite, discarded after the call).
        x = jnp.concatenate([x, jnp.zeros((B_pad - B, S, D_in), x.dtype)], axis=0)
        lens = jnp.concatenate(
            [lens, jnp.ones((B_pad - B,), lens.dtype)], axis=0)
    lens2d = lens.reshape(B_pad, 1).astype(jnp.int32)

    # bf16 MXU operands pay off on v6e/v7x at production D_in/E; keep f32 here
    # so the toy-size correctness check stays tight.
    compute_dtype = jnp.bfloat16 if use_bf16_matmul else jnp.float32
    kernel = functools.partial(_attn_pool_kernel, compute_dtype=compute_dtype)

    out = pl.pallas_call(
        kernel,
        out_shape=jax.ShapeDtypeStruct((B_pad, E), jnp.float32),
        grid=(B_pad // TB,),
        in_specs=[
            pl.BlockSpec((TB, S, D_in), lambda t: (t, 0, 0)),   # x tile
            pl.BlockSpec((TB, 1), lambda t: (t, 0)),            # lens tile
            pl.BlockSpec(wqkv.shape, lambda t: (0, 0)),         # fused Wqkv
            pl.BlockSpec(bqkv.shape, lambda t: (0, 0)),         # fused bqkv
            pl.BlockSpec(wo.shape, lambda t: (0, 0)),           # out_proj W
            pl.BlockSpec(bo.shape, lambda t: (0, 0)),           # out_proj b
        ],
        out_specs=pl.BlockSpec((TB, E), lambda t: (t, 0)),
        compiler_params=pltpu.CompilerParams(
            dimension_semantics=("parallel",)),                 # 2 TCs on v7x
    )(x, lens2d, wqkv, bqkv, wo, bo)
    return out[:B]                                              # [B, E]


def init_params(key, input_dim, embed_dim):
    def lin(k, fan_in, fan_out):
        bound = 1.0 / math.sqrt(fan_in)
        kw, kb = jax.random.split(k)
        w = jax.random.uniform(kw, (fan_in, fan_out), jnp.float32, -bound, bound)
        b = jax.random.uniform(kb, (1, fan_out), jnp.float32, -bound, bound)
        return w, b

    keys = jax.random.split(key, 7)
    p = {}
    p["wq1"], p["bq1"] = lin(keys[0], input_dim, embed_dim)
    p["wk1"], p["bk1"] = lin(keys[1], input_dim, embed_dim)
    p["wv1"], p["bv1"] = lin(keys[2], input_dim, embed_dim)
    p["wq2"], p["bq2"] = lin(keys[3], embed_dim, embed_dim)
    p["wk2"], p["bk2"] = lin(keys[4], embed_dim, embed_dim)
    p["wv2"], p["bv2"] = lin(keys[5], embed_dim, embed_dim)
    p["wo"],  p["bo"]  = lin(keys[6], embed_dim, embed_dim)
    return p


def reference(x, lens, p):
    """Pure-JAX replica of the PyTorch per-sample loop (unfused, for validation)."""
    B, S, _ = x.shape
    E = p["wo"].shape[1]
    outs = []
    for b in range(B):
        L = int(lens[b])
        xb = x[b, :L]
        q1 = xb @ p["wq1"] + p["bq1"]
        k1 = xb @ p["wk1"] + p["bk1"]
        v1 = xb @ p["wv1"] + p["bv1"]
        q2 = q1 @ p["wq2"] + p["bq2"]
        k2 = k1 @ p["wk2"] + p["bk2"]
        v2 = v1 @ p["wv2"] + p["bv2"]
        scores = (q2 / math.sqrt(E)) @ k2.T
        attn = jax.nn.softmax(scores, axis=-1)
        o = (attn @ v2) @ p["wo"] + p["bo"]
        outs.append(jnp.max(o, axis=0))
    return jnp.stack(outs)


if __name__ == "__main__":
    B, S, D_IN, E = 12, 8, 16, 32

    key = jax.random.PRNGKey(0)
    kx, kp = jax.random.split(key)
    x = jax.random.normal(kx, (B, S, D_IN), dtype=jnp.float32)
    lens = jnp.array([8, 5, 3, 8, 1, 7, 2, 6, 4, 8, 5, 3], dtype=jnp.int32)
    params = init_params(kp, D_IN, E)

    out = multihead_self_attention_pallas(x, lens, params)
    out = jax.block_until_ready(out)

    ref = reference(x, lens, params)
    assert out.shape == (B, E)
    assert jnp.allclose(out, ref, rtol=2e-3, atol=2e-3), (
        "mismatch vs reference: max abs diff = "
        f"{float(jnp.max(jnp.abs(out - ref)))}")

    print("KERNEL_OK")
</pallas_src>

<mosaic_0001>
module attributes {stable_mosaic.version = 11 : i64} {
  func.func @_attn_pool_kernel(%arg0: i32, %arg1: memref<8x8x16xf32, #tpu.memory_space<vmem>>, %arg2: memref<8x1xi32, #tpu.memory_space<vmem>>, %arg3: memref<16x96xf32, #tpu.memory_space<vmem>>, %arg4: memref<1x96xf32, #tpu.memory_space<vmem>>, %arg5: memref<32x32xf32, #tpu.memory_space<vmem>>, %arg6: memref<1x32xf32, #tpu.memory_space<vmem>>, %arg7: memref<8x32xf32, #tpu.memory_space<vmem>>) attributes {dimension_semantics = [#tpu.dimension_semantics<parallel>], iteration_bounds = array<i64: 2>, scalar_prefetch = 0 : i64, scratch_operands = 0 : i64, tpu.core_type = #tpu.core_type<tc>, window_params = [{transform_indices = @transform_0, window_bounds = array<i64: 8, 8, 16>}, {transform_indices = @transform_1, window_bounds = array<i64: 8, 1>}, {pipeline_mode = #tpu.pipeline_mode<synchronous>, transform_indices = @transform_2, window_bounds = array<i64: 16, 96>}, {pipeline_mode = #tpu.pipeline_mode<synchronous>, transform_indices = @transform_3, window_bounds = array<i64: 1, 96>}, {pipeline_mode = #tpu.pipeline_mode<synchronous>, transform_indices = @transform_4, window_bounds = array<i64: 32, 32>}, {pipeline_mode = #tpu.pipeline_mode<synchronous>, transform_indices = @transform_5, window_bounds = array<i64: 1, 32>}, {transform_indices = @transform_6, window_bounds = array<i64: 8, 32>}]} {
    %c0 = arith.constant 0 : index
    %c0_0 = arith.constant 0 : index
    %c0_1 = arith.constant 0 : index
    %0 = vector.load %arg1[%c0, %c0_0, %c0_1] : memref<8x8x16xf32, #tpu.memory_space<vmem>>, vector<8x8x16xf32>
    %1 = vector.shape_cast %0 : vector<8x8x16xf32> to vector<64x16xf32>
    %c0_2 = arith.constant 0 : index
    %c0_3 = arith.constant 0 : index
    %2 = vector.load %arg3[%c0_2, %c0_3] : memref<16x96xf32, #tpu.memory_space<vmem>>, vector<16x96xf32>
    %cst = arith.constant dense<0.000000e+00> : vector<64x96xf32>
    %3 = tpu.matmul %1, %2, %cst {dimension_numbers = #tpu.dot_dimension_numbers<[1], [0], [0], [1], [0, 0, 1, 1], [], []>} : vector<64x16xf32>, vector<16x96xf32>, vector<64x96xf32> -> vector<64x96xf32>
    %c0_4 = arith.constant 0 : index
    %c0_5 = arith.constant 0 : index
    %4 = vector.load %arg4[%c0_4, %c0_5] : memref<1x96xf32, #tpu.memory_space<vmem>>, vector<1x96xf32>
    %5 = vector.broadcast %4 : vector<1x96xf32> to vector<64x96xf32>
    %6 = arith.addf %3, %5 : vector<64x96xf32>
    %7 = vector.extract_strided_slice %6 {offsets = [0, 0], sizes = [64, 32], strides = [1, 1]} : vector<64x96xf32> to vector<64x32xf32>
    %8 = vector.shape_cast %7 : vector<64x32xf32> to vector<8x8x32xf32>
    %9 = vector.extract_strided_slice %6 {offsets = [0, 32], sizes = [64, 32], strides = [1, 1]} : vector<64x96xf32> to vector<64x32xf32>
    %10 = vector.shape_cast %9 : vector<64x32xf32> to vector<8x8x32xf32>
    %11 = vector.extract_strided_slice %6 {offsets = [0, 64], sizes = [64, 32], strides = [1, 1]} : vector<64x96xf32> to vector<64x32xf32>
    %12 = vector.shape_cast %11 : vector<64x32xf32> to vector<8x8x32xf32>
    "tpu.trace_start"() <{level = 10 : i32, message = "bqd,bkd->bqk"}> : () -> ()
    %cst_6 = arith.constant dense<0.000000e+00> : vector<8x8x8xf32>
    %13 = tpu.matmul %8, %10, %cst_6 {dimension_numbers = #tpu.dot_dimension_numbers<[2], [2], [1], [1], [0, 0, 0, 1, 1, 1], [0], [0]>} : vector<8x8x32xf32>, vector<8x8x32xf32>, vector<8x8x8xf32> -> vector<8x8x8xf32>
    "tpu.trace_stop"() : () -> ()
    %c0_7 = arith.constant 0 : index
    %c0_8 = arith.constant 0 : index
    %14 = vector.load %arg2[%c0_7, %c0_8] : memref<8x1xi32, #tpu.memory_space<vmem>>, vector<8x1xi32>
    %15 = vector.shape_cast %14 : vector<8x1xi32> to vector<8x1x1xi32>
    %16 = tpu.iota {dimensions = array<i32: 2>} : vector<8x1x8xi32>
    %17 = vector.broadcast %15 : vector<8x1x1xi32> to vector<8x1x8xi32>
    %18 = arith.cmpi slt, %16, %17 : vector<8x1x8xi32>
    %cst_9 = arith.constant -1.000000e+30 : f32
    %19 = vector.shape_cast %18 : vector<8x1x8xi1> to vector<8x1x8xi1>
    %20 = vector.broadcast %19 : vector<8x1x8xi1> to vector<8x8x8xi1>
    %21 = vector.broadcast %cst_9 : f32 to vector<8x8x8xf32>
    %22 = arith.select %20, %13, %21 : vector<8x8x8xi1>, vector<8x8x8xf32>
    %cst_10 = arith.constant dense<0xFF800000> : vector<8x8xf32>
    %23 = vector.multi_reduction <maximumf>, %22, %cst_10 [2] : vector<8x8x8xf32> to vector<8x8xf32>
    %24 = vector.shape_cast %23 : vector<8x8xf32> to vector<8x8x1xf32>
    %25 = vector.broadcast %24 : vector<8x8x1xf32> to vector<8x8x8xf32>
    %26 = arith.subf %22, %25 : vector<8x8x8xf32>
    %27 = math.exp %26 : vector<8x8x8xf32>
    %cst_11 = arith.constant dense<0.000000e+00> : vector<8x8xf32>
    %28 = vector.multi_reduction <add>, %27, %cst_11 [2] : vector<8x8x8xf32> to vector<8x8xf32>
    %29 = vector.shape_cast %28 : vector<8x8xf32> to vector<8x8x1xf32>
    %30 = tpu.reciprocal %29 {approx = true} : vector<8x8x1xf32> -> vector<8x8x1xf32>
    %31 = vector.broadcast %30 : vector<8x8x1xf32> to vector<8x8x8xf32>
    %32 = arith.mulf %27, %31 : vector<8x8x8xf32>
    "tpu.trace_start"() <{level = 10 : i32, message = "bqk,bkd->bqd"}> : () -> ()
    %cst_12 = arith.constant dense<0.000000e+00> : vector<8x8x32xf32>
    %33 = tpu.matmul %32, %12, %cst_12 {dimension_numbers = #tpu.dot_dimension_numbers<[2], [1], [1], [2], [0, 0, 0, 1, 1, 2], [0], [0]>} : vector<8x8x8xf32>, vector<8x8x32xf32>, vector<8x8x32xf32> -> vector<8x8x32xf32>
    "tpu.trace_stop"() : () -> ()
    %34 = vector.shape_cast %33 : vector<8x8x32xf32> to vector<64x32xf32>
    %c0_13 = arith.constant 0 : index
    %c0_14 = arith.constant 0 : index
    %35 = vector.load %arg5[%c0_13, %c0_14] : memref<32x32xf32, #tpu.memory_space<vmem>>, vector<32x32xf32>
    %cst_15 = arith.constant dense<0.000000e+00> : vector<64x32xf32>
    %36 = tpu.matmul %34, %35, %cst_15 {dimension_numbers = #tpu.dot_dimension_numbers<[1], [0], [0], [1], [0, 0, 1, 1], [], []>} : vector<64x32xf32>, vector<32x32xf32>, vector<64x32xf32> -> vector<64x32xf32>
    %c0_16 = arith.constant 0 : index
    %c0_17 = arith.constant 0 : index
    %37 = vector.load %arg6[%c0_16, %c0_17] : memref<1x32xf32, #tpu.memory_space<vmem>>, vector<1x32xf32>
    %38 = vector.broadcast %37 : vector<1x32xf32> to vector<64x32xf32>
    %39 = arith.addf %36, %38 : vector<64x32xf32>
    %40 = vector.shape_cast %39 : vector<64x32xf32> to vector<8x8x32xf32>
    %41 = tpu.iota {dimensions = array<i32: 1>} : vector<8x8x1xi32>
    %42 = vector.broadcast %15 : vector<8x1x1xi32> to vector<8x8x1xi32>
    %43 = arith.cmpi slt, %41, %42 : vector<8x8x1xi32>
    %cst_18 = arith.constant -1.000000e+30 : f32
    %44 = vector.shape_cast %43 : vector<8x8x1xi1> to vector<8x8x1xi1>
    %45 = vector.broadcast %44 : vector<8x8x1xi1> to vector<8x8x32xi1>
    %46 = vector.broadcast %cst_18 : f32 to vector<8x8x32xf32>
    %47 = arith.select %45, %40, %46 : vector<8x8x32xi1>, vector<8x8x32xf32>
    %cst_19 = arith.constant dense<0xFF800000> : vector<8x32xf32>
    %48 = vector.multi_reduction <maximumf>, %47, %cst_19 [1] : vector<8x8x32xf32> to vector<8x32xf32>
    %c0_20 = arith.constant 0 : index
    %c0_21 = arith.constant 0 : index
    %49 = vector.load %arg7[%c0_20, %c0_21] : memref<8x32xf32, #tpu.memory_space<vmem>>, vector<8x32xf32>
    tpu.vector_store %arg7[%c0_20, %c0_21], %48 {strides = array<i32>} : memref<8x32xf32, #tpu.memory_space<vmem>>, vector<8x32xf32>,
    return
  }
  func.func @transform_0(%arg0: i32) -> (i32, i32, i32) {
    %c0_i32 = arith.constant 0 : i32
    %c0_i32_0 = arith.constant 0 : i32
    %c0_i32_1 = arith.constant 0 : i32
    return %arg0, %c0_i32, %c0_i32_0 : i32, i32, i32
  }
  func.func @transform_1(%arg0: i32) -> (i32, i32) {
    %c0_i32 = arith.constant 0 : i32
    %c0_i32_0 = arith.constant 0 : i32
    return %arg0, %c0_i32 : i32, i32
  }
  func.func @transform_2(%arg0: i32) -> (i32, i32) {
    %c0_i32 = arith.constant 0 : i32
    %c0_i32_0 = arith.constant 0 : i32
    %c0_i32_1 = arith.constant 0 : i32
    return %c0_i32, %c0_i32_0 : i32, i32
  }
  func.func @transform_3(%arg0: i32) -> (i32, i32) {
    %c0_i32 = arith.constant 0 : i32
    %c0_i32_0 = arith.constant 0 : i32
    %c0_i32_1 = arith.constant 0 : i32
    return %c0_i32, %c0_i32_0 : i32, i32
  }
  func.func @transform_4(%arg0: i32) -> (i32, i32) {
    %c0_i32 = arith.constant 0 : i32
    %c0_i32_0 = arith.constant 0 : i32
    %c0_i32_1 = arith.constant 0 : i32
    return %c0_i32, %c0_i32_0 : i32, i32
  }
  func.func @transform_5(%arg0: i32) -> (i32, i32) {
    %c0_i32 = arith.constant 0 : i32
    %c0_i32_0 = arith.constant 0 : i32
    %c0_i32_1 = arith.constant 0 : i32
    return %c0_i32, %c0_i32_0 : i32, i32
  }
  func.func @transform_6(%arg0: i32) -> (i32, i32) {
    %c0_i32 = arith.constant 0 : i32
    %c0_i32_0 = arith.constant 0 : i32
    return %arg0, %c0_i32 : i32, i32
  }
}

</mosaic_0001>

<llo_original>
// kernel: tpu_custom_call.1
$region0: #{tpu_custom_call.1}
  #allocation0 [shape = 'u32[]', space=smem, size = 0x4, offset = 0x4, fixed_abs, tag = 'smem constant byte address 0x4 - core index']
  #allocation1 [shape = 'u32[72,128]{1,0:T(1,128)}', space=vmem, size = 0x9000, scoped, tag = 'internal scratch']
  %s0 = inlined_call_operand.hbm [shape: f32[16,8,16], index: 0, kind: input, shape index: {}]
  %s1 = inlined_call_operand.vmem [shape: s32[16,1], index: 1, kind: input, shape index: {}]
  %s2 = inlined_call_operand.vmem [shape: f32[16,96], index: 2, kind: input, shape index: {}]
  %s3 = inlined_call_operand.vmem [shape: f32[1,96], index: 3, kind: input, shape index: {}]
  %s4 = inlined_call_operand.hbm [shape: f32[32,32], index: 4, kind: input, shape index: {}]
  %s5 = inlined_call_operand.vmem [shape: f32[1,32], index: 5, kind: input, shape index: {}]
  %s6 = inlined_call_operand.hbm [shape: f32[16,32], index: 6, kind: output, shape index: {}]
  %s7 = sld [smem:[#allocation0]]
  $region65: #{tpu_custom_call.1} parent=0
    _
  %s9 = ssub.s32 1, %s7
  %s10 = scalar_select 0, %s9, %s7
  $region1: #{tpu_custom_call.1} parent=0
    #allocation2 [shape = 'u8[65536]{0}', space=vmem, size = 0x10000, scoped, tag = 'input window, operand 0']
    #allocation3 [shape = 's32[2]{0}', space=sflag, size = 0x8, scoped, tag = 'scoped memory for tpu_custom_call.1']
    #allocation4 [shape = 's32[2]{0}', space=sflag, size = 0x8, scoped, tag = 'scoped memory for tpu_custom_call.1']
    #allocation5 [shape = 'u8[16384]{0}', space=vmem, size = 0x4000, scoped, tag = 'input window, operand 4, single buffered']
    #allocation6 [shape = 's32[1]{0}', space=sflag, size = 0x4, scoped, tag = 'scoped memory for tpu_custom_call.1']
    #allocation7 [shape = 'u8[8192]{0}', space=vmem, size = 0x2000, scoped, tag = 'output window, operand 0']
    %11 = vsyncpa [#allocation3], 0
    %s12 = scalar_lea.sflag [#allocation3], 1
    %13 = vsyncpa %s12, 0
    %14 = vsyncpa [#allocation6], 0
    %15 = vsyncpa [#allocation4], 0
    %s16 = scalar_lea.sflag [#allocation4], 1
    %17 = vsyncpa %s16, 0
    loop: start=0, step=1, limit=4
    $region2: #{tpu_custom_call.1} parent=1 // loop_pre_header
      _
    $region3: #{tpu_custom_call.1} parent=1 // loop_header
      %s19 = sphi 0, %s23
      %p20 = scmp.ge.s32.totalorder %s19, 4
      %s29 = sphi 0, %s31
      %s32 = sphi 0, %s29
      %s33 = sphi 0, %s32
      %s49 = sphi 0, %s33
      %s55 = sphi 0, %s57
      %s58 = sphi 0, %s55
      %s59 = sphi 0, %s58
      %s75 = sphi 0, %s59
      %s79 = sphi 0, %s79
      %s81 = sphi 0, %s79
      %s82 = sphi 0, %s81
      %s96 = sphi 0, %s82
      %s100 = sphi 0, %s100
      %s102 = sphi 0, %s100
      %s103 = sphi 0, %s102
      %s117 = sphi 0, %s103
      %s121 = sphi 0, %s121
      %s123 = sphi 0, %s121
      %s124 = sphi 0, %s123
      %s138 = sphi 0, %s124
      %s142 = sphi 0, %s142
      %s144 = sphi 0, %s142
      %s145 = sphi 0, %s144
      %s159 = sphi 0, %s145
      %s165 = sphi 0, %s167
      %s168 = sphi 0, %s165
      %s169 = sphi 0, %s168
      %s185 = sphi 0, %s169
    $region4: #{tpu_custom_call.1} parent=1 // loop_header_branch
      %22 = sbr.rel (%p20) target = $region8
    $region5: #{tpu_custom_call.1} parent=1 // loop_body
      %s24 = ssub.s32 %s19, 1
      %s25 = ssub.s32 %s19, 2
      %s26 = sadd.s32 %s19, 1
      %s27 = ssub.s32 %s19, %s26
      %p28 = scmp.eq.s32.totalorder %s27, 0
      %s30 = sadd.s32 %s29, 1
      %s31 = scalar_select %p28, %s29, %s30
      %p34 = pneg %p28
      %p35 = scmp.eq.s32.totalorder %s19, 1
      %p36 = por %p34, %p35
      %p37 = scmp.ne.s32.totalorder %s29, %s32
      %p38 = scmp.eq.s32.totalorder %s19, 0
      %p39 = por %p37, %p38
      %p40 = scmp.ne.s32.totalorder %s29, %s32
      %p41 = scmp.eq.s32.totalorder %s24, 1
      %p42 = por %p40, %p41
      %p43 = scmp.ne.s32.totalorder %s32, %s33
      %p44 = scmp.eq.s32.totalorder %s24, 0
      %p45 = por %p43, %p44
      %p46 = scmp.ne.s32.totalorder %s32, %s33
      %p47 = scmp.eq.s32.totalorder %s25, 1
      %p48 = por %p46, %p47
      %p50 = scmp.ne.s32.totalorder %s33, %s49
      %p51 = scmp.eq.s32.totalorder %s25, 0
      %p52 = por %p50, %p51
      %s53 = ssub.s32 %s19, %s26
      %p54 = scmp.eq.s32.totalorder %s53, 0
      %s56 = sadd.s32 %s55, 1
      %s57 = scalar_select %p54, %s55, %s56
      %p60 = pneg %p54
      %p61 = scmp.eq.s32.totalorder %s19, 1
      %p62 = por %p60, %p61
      %p63 = scmp.ne.s32.totalorder %s55, %s58
      %p64 = scmp.eq.s32.totalorder %s19, 0
      %p65 = por %p63, %p64
      %p66 = scmp.ne.s32.totalorder %s55, %s58
      %p67 = scmp.eq.s32.totalorder %s24, 1
      %p68 = por %p66, %p67
      %p69 = scmp.ne.s32.totalorder %s58, %s59
      %p70 = scmp.eq.s32.totalorder %s24, 0
      %p71 = por %p69, %p70
      %p72 = scmp.ne.s32.totalorder %s58, %s59
      %p73 = scmp.eq.s32.totalorder %s25, 1
      %p74 = por %p72, %p73
      %p76 = scmp.ne.s32.totalorder %s59, %s75
      %p77 = scmp.eq.s32.totalorder %s25, 0
      %p78 = por %p76, %p77
      %s80 = sadd.s32 %s79, 1
      %p83 = scmp.eq.s32.totalorder %s19, 1
      %p84 = scmp.ne.s32.totalorder %s79, %s81
      %p85 = scmp.eq.s32.totalorder %s19, 0
      %p86 = por %p84, %p85
      %p87 = scmp.ne.s32.totalorder %s79, %s81
      %p88 = scmp.eq.s32.totalorder %s24, 1
      %p89 = por %p87, %p88
      %p90 = scmp.ne.s32.totalorder %s81, %s82
      %p91 = scmp.eq.s32.totalorder %s24, 0
      %p92 = por %p90, %p91
      %p93 = scmp.ne.s32.totalorder %s81, %s82
      %p94 = scmp.eq.s32.totalorder %s25, 1
      %p95 = por %p93, %p94
      %p97 = scmp.ne.s32.totalorder %s82, %s96
      %p98 = scmp.eq.s32.totalorder %s25, 0
      %p99 = por %p97, %p98
      %s101 = sadd.s32 %s100, 1
      %p104 = scmp.eq.s32.totalorder %s19, 1
      %p105 = scmp.ne.s32.totalorder %s100, %s102
      %p106 = scmp.eq.s32.totalorder %s19, 0
      %p107 = por %p105, %p106
      %p108 = scmp.ne.s32.totalorder %s100, %s102
      %p109 = scmp.eq.s32.totalorder %s24, 1
      %p110 = por %p108, %p109
      %p111 = scmp.ne.s32.totalorder %s102, %s103
      %p112 = scmp.eq.s32.totalorder %s24, 0
      %p113 = por %p111, %p112
      %p114 = scmp.ne.s32.totalorder %s102, %s103
      %p115 = scmp.eq.s32.totalorder %s25, 1
      %p116 = por %p114, %p115
      %p118 = scmp.ne.s32.totalorder %s103, %s117
      %p119 = scmp.eq.s32.totalorder %s25, 0
      %p120 = por %p118, %p119
      %s122 = sadd.s32 %s121, 1
      %p125 = scmp.eq.s32.totalorder %s19, 1
      %p126 = scmp.ne.s32.totalorder %s121, %s123
      %p127 = scmp.eq.s32.totalorder %s19, 0
      %p128 = por %p126, %p127
      %p129 = scmp.ne.s32.totalorder %s121, %s123
      %p130 = scmp.eq.s32.totalorder %s24, 1
      %p131 = por %p129, %p130
      %p132 = scmp.ne.s32.totalorder %s123, %s124
      %p133 = scmp.eq.s32.totalorder %s24, 0
      %p134 = por %p132, %p133
      %p135 = scmp.ne.s32.totalorder %s123, %s124
      %p136 = scmp.eq.s32.totalorder %s25, 1
      %p137 = por %p135, %p136
      %p139 = scmp.ne.s32.totalorder %s124, %s138
      %p140 = scmp.eq.s32.totalorder %s25, 0
      %p141 = por %p139, %p140
      %s143 = sadd.s32 %s142, 1
      %p146 = scmp.eq.s32.totalorder %s19, 1
      %p147 = scmp.ne.s32.totalorder %s142, %s144
      %p148 = scmp.eq.s32.totalorder %s19, 0
      %p149 = por %p147, %p148
      %p150 = scmp.ne.s32.totalorder %s142, %s144
      %p151 = scmp.eq.s32.totalorder %s24, 1
      %p152 = por %p150, %p151
      %p153 = scmp.ne.s32.totalorder %s144, %s145
      %p154 = scmp.eq.s32.totalorder %s24, 0
      %p155 = por %p153, %p154
      %p156 = scmp.ne.s32.totalorder %s144, %s145
      %p157 = scmp.eq.s32.totalorder %s25, 1
      %p158 = por %p156, %p157
      %p160 = scmp.ne.s32.totalorder %s145, %s159
      %p161 = scmp.eq.s32.totalorder %s25, 0
      %p162 = por %p160, %p161
      %s163 = ssub.s32 %s19, %s26
      %p164 = scmp.eq.s32.totalorder %s163, 0
      %s166 = sadd.s32 %s165, 1
      %s167 = scalar_select %p164, %s165, %s166
      %p170 = pneg %p164
      %p171 = scmp.eq.s32.totalorder %s19, 1
      %p172 = por %p170, %p171
      %p173 = scmp.ne.s32.totalorder %s165, %s168
      %p174 = scmp.eq.s32.totalorder %s19, 0
      %p175 = por %p173, %p174
      %p176 = scmp.ne.s32.totalorder %s165, %s168
      %p177 = scmp.eq.s32.totalorder %s24, 1
      %p178 = por %p176, %p177
      %p179 = scmp.ne.s32.totalorder %s168, %s169
      %p180 = scmp.eq.s32.totalorder %s24, 0
      %p181 = por %p179, %p180
      %p182 = scmp.ne.s32.totalorder %s168, %s169
      %p183 = scmp.eq.s32.totalorder %s25, 1
      %p184 = por %p182, %p183
      %p186 = scmp.ne.s32.totalorder %s169, %s185
      %p187 = scmp.eq.s32.totalorder %s25, 0
      %p188 = por %p186, %p187
      %p189 = scmp.le.s32.totalorder 1, %s19
      %p190 = scmp.lt.s32.totalorder %s19, 3
      %p191 = pnand %p189, %p190
      %p192 = pneg %p191
      // Predicated region
      $region9: #{tpu_custom_call.1} parent=5 // pred_check
        _
      $region10: #{tpu_custom_call.1} parent=5 // pred_check_branch
        %194 = sbr.rel (%p191) target = $region12
      $region11: #{tpu_custom_call.1} parent=5 // pred_region
        %s195 = ssub.s32 %s19, 1
        // Predicated region
        $region13: #{tpu_custom_call.1} parent=11 // pred_check
          %p196 = pneg %p92
        $region14: #{tpu_custom_call.1} parent=11 // pred_check_branch
          %198 = sbr.rel (%p196) target = $region16
        $region15: #{tpu_custom_call.1} parent=11 // pred_region
          _
        $region16: #{tpu_custom_call.1} parent=11 // pred_fallthru
          _
        // Predicated region
        $region17: #{tpu_custom_call.1} parent=11 // pred_check
          %p199 = pneg %p113
        $region18: #{tpu_custom_call.1} parent=11 // pred_check_branch
          %201 = sbr.rel (%p199) target = $region20
        $region19: #{tpu_custom_call.1} parent=11 // pred_region
          _
        $region20: #{tpu_custom_call.1} parent=11 // pred_fallthru
          _
        // Predicated region
        $region21: #{tpu_custom_call.1} parent=11 // pred_check
          %p202 = pneg %p134
        $region22: #{tpu_custom_call.1} parent=11 // pred_check_branch
          %204 = sbr.rel (%p202) target = $region24
        $region23: #{tpu_custom_call.1} parent=11 // pred_region
          %206 = vsyncadd [#allocation6], 0
          %s207 = sshll.u32 %s4, 4
          %s208 = int_to_ptr.hbm [resolvable:$true] %s207
          %s209 = sshll.u32 [#allocation5], 4
          %s210 = int_to_ptr.vmem [resolvable:$true] %s209
          %215 = dma.hbm_to_vmem [thread:$0]  %s208, 512, %s210, [#allocation6], 128, 128, 8
        $region24: #{tpu_custom_call.1} parent=11 // pred_fallthru
          _
        // Predicated region
        $region25: #{tpu_custom_call.1} parent=11 // pred_check
          %p216 = pneg %p155
        $region26: #{tpu_custom_call.1} parent=11 // pred_check_branch
          %218 = sbr.rel (%p216) target = $region28
        $region27: #{tpu_custom_call.1} parent=11 // pred_region
          _
        $region28: #{tpu_custom_call.1} parent=11 // pred_fallthru
          _
      $region12: #{tpu_custom_call.1} parent=5 // pred_fallthru
        _
      %p219 = scmp.lt.s32.totalorder %s19, 2
      // Predicated region
      $region29: #{tpu_custom_call.1} parent=5 // pred_check
        %p220 = pneg %p219
      $region30: #{tpu_custom_call.1} parent=5 // pred_check_branch
        %222 = sbr.rel (%p220) target = $region32
      $region31: #{tpu_custom_call.1} parent=5 // pred_region
        // Predicated region
        $region33: #{tpu_custom_call.1} parent=31 // pred_check
          %p223 = pneg %p39
        $region34: #{tpu_custom_call.1} parent=31 // pred_check_branch
          %225 = sbr.rel (%p223) target = $region36
        $region35: #{tpu_custom_call.1} parent=31 // pred_region
          %s226 = sand.u32 %s29, 1
          %s227 = scalar_lea.sflag [#allocation3], %s226
          %s228 = sand.u32 %s29, 1
          %s229 = smul.addr %s228, 64
          %s230 = scalar_lea.vmem [#allocation2], %s229
          %s231 = smul.u32 8, %s19
          %233 = vsyncadd %s227, 0
          %s234 = smul.addr %s231, 8
          %s235 = scalar_lea.hbm %s0, %s234
          %s236 = sshll.u32 %s235, 4
          %s237 = int_to_ptr.hbm [resolvable:$true] %s236
          %s238 = sshll.u32 %s230, 4
          %s239 = int_to_ptr.vmem [resolvable:$true] %s238
          %244 = dma.hbm_to_vmem [thread:$0]  %s237, 1024, %s239, %s227, 128, 128, 8
        $region36: #{tpu_custom_call.1} parent=31 // pred_fallthru
          _
        // Predicated region
        $region37: #{tpu_custom_call.1} parent=31 // pred_check
          %p245 = pneg %p65
        $region38: #{tpu_custom_call.1} parent=31 // pred_check_branch
          %247 = sbr.rel (%p245) target = $region40
        $region39: #{tpu_custom_call.1} parent=31 // pred_region
          %p248 = scmp.lt.s32.totalorder %s19, 1
          %s249 = scalar_select %p248, %s19, 1
          %s250 = smul.addr %s249, 8
          %s251 = scalar_lea.vmem %s1, %s250
        $region40: #{tpu_custom_call.1} parent=31 // pred_fallthru
          _
      $region32: #{tpu_custom_call.1} parent=5 // pred_fallthru
        _
      %p252 = scmp.le.s32.totalorder 1, %s19
      %p253 = scmp.lt.s32.totalorder %s19, 3
      %p254 = pnand %p252, %p253
      %p255 = pneg %p254
      // Predicated region
      $region41: #{tpu_custom_call.1} parent=5 // pred_check
        _
      $region42: #{tpu_custom_call.1} parent=5 // pred_check_branch
        %257 = sbr.rel (%p254) target = $region44
      $region43: #{tpu_custom_call.1} parent=5 // pred_region
        %s258 = ssub.s32 %s19, 1
        %s259 = sand.u32 %s32, 1
        %s260 = scalar_lea.sflag [#allocation3], %s259
        %s261 = sand.u32 %s32, 1
        %s262 = smul.addr %s261, 64
        %s263 = scalar_lea.vmem [#allocation2], %s262
        // Predicated region
        $region45: #{tpu_custom_call.1} parent=43 // pred_check
          %p264 = pneg %p45
        $region46: #{tpu_custom_call.1} parent=43 // pred_check_branch
          %266 = sbr.rel (%p264) target = $region48
        $region47: #{tpu_custom_call.1} parent=43 // pred_region
          %268 = dma.done %s260, 1024
        $region48: #{tpu_custom_call.1} parent=43 // pred_fallthru
          _
        // Predicated region
        $region49: #{tpu_custom_call.1} parent=43 // pred_check
          %p269 = pneg %p134
        $region50: #{tpu_custom_call.1} parent=43 // pred_check_branch
          %271 = sbr.rel (%p269) target = $region52
        $region51: #{tpu_custom_call.1} parent=43 // pred_region
          %273 = dma.done [#allocation6], 512
        $region52: #{tpu_custom_call.1} parent=43 // pred_fallthru
          _
        %s274 = sand.u32 %s32, 1
        %s275 = scalar_lea.sflag [#allocation3], %s274
        %s276 = sand.u32 %s32, 1
        %s277 = smul.addr %s276, 64
        %s278 = scalar_lea.vmem [#allocation2], %s277
        %p279 = pneg %p45
        %p280 = pneg %p42
        %p281 = scmp.lt.s32.totalorder %s24, 1
        %s282 = scalar_select %p281, %s24, 1
        %s283 = smul.addr %s282, 8
        %s284 = scalar_lea.vmem %s1, %s283
        %p285 = pneg %p71
        %p286 = pneg %p68
        %p287 = pneg %p92
        %p288 = pneg %p89
        %p289 = pneg %p113
        %p290 = pneg %p110
        %p291 = pneg %p134
        %p292 = pneg %p131
        %p293 = pneg %p155
        %p294 = pneg %p152
        %p295 = pneg %p181
        %p296 = pneg %p178
        %s297 = sand.u32 %s168, 1
        %s298 = scalar_lea.sflag [#allocation4], %s297
        %s299 = sand.u32 %s168, 1
        %s300 = smul.addr %s299, 8
        %s301 = scalar_lea.vmem [#allocation7], %s300
        %s302 = smul.u32 8, %s24
        %p303 = scmp.lt.s32.totalorder %s24, 1
        %s304 = scalar_select %p303, %s24, 1
        %s305 = smul.addr %s304, 8
        %s306 = scalar_lea.vmem %s1, %s305
        %v307 = vld [vmem:[%s263] sm:$0xff]
        %v308 = vld [vmem:[%s263 + $0x8] sm:$0xff]
        %v309 = vld [vmem:[%s263 + $0x10] sm:$0xff]
        %v310 = vld [vmem:[%s263 + $0x18] sm:$0xff]
        %v311 = vld [vmem:[%s263 + $0x20] sm:$0xff]
        %v312 = vld [vmem:[%s263 + $0x28] sm:$0xff]
        %v313 = vld [vmem:[%s263 + $0x30] sm:$0xff]
        %v314 = vld [vmem:[%s263 + $0x38] sm:$0xff]
        %v315 = vld [vmem:[%s2] sm:$0xff]
        %v316 = vld [vmem:[%s2 + $0x8] sm:$0xff]
        %v317 = vld [vmem:[%s3] sm:$0x1]
        %v319 = vperm.slane %v317, 0
        %vm321 = vcmask 130048
        %v323 = vsel %vm321, %v307, 0
        %v326 = vsel %vm321, %v308, 0
        %v329 = vsel %vm321, %v309, 0
        %v332 = vsel %vm321, %v310, 0
        %v335 = vsel %vm321, %v311, 0
        %v338 = vsel %vm321, %v312, 0
        %v341 = vsel %vm321, %v313, 0
        %v344 = vsel %vm321, %v314, 0
        %346 = vmatpush.msra.mxu0 0.0
        %347 = vmatpush.msra.mxu0 0.0
        %348 = vmatpush.msra.mxu0 0.0
        %349 = vmatpush.msra.mxu0 0.0
        %350 = vmatpush.msra.mxu0 0.0
        %351 = vmatpush.msra.mxu0 0.0
        %352 = vmatpush.msra.mxu0 0.0
        %353 = vmatpush.msra.mxu0 0.0
        %354 = vmatpush.msra.mxu0 0.0
        %355 = vmatpush.msra.mxu0 0.0
        %356 = vmatpush.msra.mxu0 0.0
        %357 = vmatpush.msra.mxu0 0.0
        %358 = vmatpush.msra.mxu0 0.0
        %359 = vmatpush.msra.mxu0 0.0
        %360 = vmatpush.msra.mxu0 %v316
        %361 = vmatpush.msra.mxu0 %v315
        %362 = vmatmul.f32.gmra.mxu0 %v323
        %v363 = vpop.f32.mrf.mxu0
        %v364 = vadd.f32 %v319, %v363
        %365 = vmatmul.f32.gmra.mxu0 %v326
        %v366 = vpop.f32.mrf.mxu0
        %v367 = vadd.f32 %v319, %v366
        %368 = vmatmul.f32.gmra.mxu0 %v329
        %v369 = vpop.f32.mrf.mxu0
        %v370 = vadd.f32 %v319, %v369
        %371 = vmatmul.f32.gmra.mxu0 %v332
        %v372 = vpop.f32.mrf.mxu0
        %v373 = vadd.f32 %v319, %v372
        %374 = vmatmul.f32.gmra.mxu0 %v335
        %v375 = vpop.f32.mrf.mxu0
        %v376 = vadd.f32 %v319, %v375
        %377 = vmatmul.f32.gmra.mxu0 %v338
        %v378 = vpop.f32.mrf.mxu0
        %v379 = vadd.f32 %v319, %v378
        %380 = vmatmul.f32.gmra.mxu0 %v341
        %v381 = vpop.f32.mrf.mxu0
        %v382 = vadd.f32 %v319, %v381
        %383 = vmatmul.f32.gmra.mxu0 %v344
        %v384 = vpop.f32.mrf.mxu0
        %v385 = vadd.f32 %v319, %v384
        %386 = vdwg.mxu0
        %388 = vrot.lane.b32.xlu0 %v364, 96
        %v389 = vpop.permute.xlu0 %388
        %vm390 = vcmask 261120
        %v391 = vsel %vm390, %v364, 0
        %v393 = vsel %vm390, %v389, 0
        %395 = vmatpush.xpose.msra.mxu0 0.0
        %396 = vmatpush.xpose.msra.mxu0 0.0
        %397 = vmatpush.xpose.msra.mxu0 0.0
        %398 = vmatpush.xpose.msra.mxu0 0.0
        %399 = vmatpush.xpose.msra.mxu0 0.0
        %400 = vmatpush.xpose.msra.mxu0 0.0
        %401 = vmatpush.xpose.msra.mxu0 0.0
        %402 = vmatpush.xpose.msra.mxu0 0.0
        %403 = vmatpush.xpose.msra.mxu0 0.0
        %404 = vmatpush.xpose.msra.mxu0 0.0
        %405 = vmatpush.xpose.msra.mxu0 0.0
        %406 = vmatpush.xpose.msra.mxu0 0.0
        %407 = vmatpush.xpose.msra.mxu0 0.0
        %408 = vmatpush.xpose.msra.mxu0 0.0
        %409 = vmatpush.xpose.msra.mxu0 0.0
        %410 = vmatpush.xpose.msra.mxu0 %v393
        %411 = vmatmul.f32.gmra.mxu0 %v391
        %v412 = vpop.f32.mrf.mxu0
        %v413 = vadd.f32 0.0, %v412
        %414 = vdwg.mxu0
        %416 = vrot.lane.b32.xlu0 %v367, 96
        %v417 = vpop.permute.xlu0 %416
        %v418 = vsel %vm390, %v367, 0
        %v420 = vsel %vm390, %v417, 0
        %422 = vmatpush.xpose.msra.mxu0 0.0
        %423 = vmatpush.xpose.msra.mxu0 0.0
        %424 = vmatpush.xpose.msra.mxu0 0.0
        %425 = vmatpush.xpose.msra.mxu0 0.0
        %426 = vmatpush.xpose.msra.mxu0 0.0
        %427 = vmatpush.xpose.msra.mxu0 0.0
        %428 = vmatpush.xpose.msra.mxu0 0.0
        %429 = vmatpush.xpose.msra.mxu0 0.0
        %430 = vmatpush.xpose.msra.mxu0 0.0
        %431 = vmatpush.xpose.msra.mxu0 0.0
        %432 = vmatpush.xpose.msra.mxu0 0.0
        %433 = vmatpush.xpose.msra.mxu0 0.0
        %434 = vmatpush.xpose.msra.mxu0 0.0
        %435 = vmatpush.xpose.msra.mxu0 0.0
        %436 = vmatpush.xpose.msra.mxu0 0.0
        %437 = vmatpush.xpose.msra.mxu0 %v420
        %438 = vmatmul.f32.gmra.mxu0 %v418
        %v439 = vpop.f32.mrf.mxu0
        %v440 = vadd.f32 0.0, %v439
        %441 = vdwg.mxu0
        %443 = vrot.lane.b32.xlu0 %v370, 96
        %v444 = vpop.permute.xlu0 %443
        %v445 = vsel %vm390, %v370, 0
        %v447 = vsel %vm390, %v444, 0
        %449 = vmatpush.xpose.msra.mxu0 0.0
        %450 = vmatpush.xpose.msra.mxu0 0.0
        %451 = vmatpush.xpose.msra.mxu0 0.0
        %452 = vmatpush.xpose.msra.mxu0 0.0
        %453 = vmatpush.xpose.msra.mxu0 0.0
        %454 = vmatpush.xpose.msra.mxu0 0.0
        %455 = vmatpush.xpose.msra.mxu0 0.0
        %456 = vmatpush.xpose.msra.mxu0 0.0
        %457 = vmatpush.xpose.msra.mxu0 0.0
        %458 = vmatpush.xpose.msra.mxu0 0.0
        %459 = vmatpush.xpose.msra.mxu0 0.0
        %460 = vmatpush.xpose.msra.mxu0 0.0
        %461 = vmatpush.xpose.msra.mxu0 0.0
        %462 = vmatpush.xpose.msra.mxu0 0.0
        %463 = vmatpush.xpose.msra.mxu0 0.0
        %464 = vmatpush.xpose.msra.mxu0 %v447
        %465 = vmatmul.f32.gmra.mxu0 %v445
        %v466 = vpop.f32.mrf.mxu0
        %v467 = vadd.f32 0.0, %v466
        %468 = vdwg.mxu0
        %470 = vrot.lane.b32.xlu0 %v373, 96
        %v471 = vpop.permute.xlu0 %470
        %v472 = vsel %vm390, %v373, 0
        %v474 = vsel %vm390, %v471, 0
        %476 = vmatpush.xpose.msra.mxu0 0.0
        %477 = vmatpush.xpose.msra.mxu0 0.0
        %478 = vmatpush.xpose.msra.mxu0 0.0
        %479 = vmatpush.xpose.msra.mxu0 0.0
        %480 = vmatpush.xpose.msra.mxu0 0.0
        %481 = vmatpush.xpose.msra.mxu0 0.0
        %482 = vmatpush.xpose.msra.mxu0 0.0
        %483 = vmatpush.xpose.msra.mxu0 0.0
        %484 = vmatpush.xpose.msra.mxu0 0.0
        %485 = vmatpush.xpose.msra.mxu0 0.0
        %486 = vmatpush.xpose.msra.mxu0 0.0
        %487 = vmatpush.xpose.msra.mxu0 0.0
        %488 = vmatpush.xpose.msra.mxu0 0.0
        %489 = vmatpush.xpose.msra.mxu0 0.0
        %490 = vmatpush.xpose.msra.mxu0 0.0
        %491 = vmatpush.xpose.msra.mxu0 %v474
        %492 = vmatmul.f32.gmra.mxu0 %v472
        %v493 = vpop.f32.mrf.mxu0
        %v494 = vadd.f32 0.0, %v493
        %495 = vdwg.mxu0
        %497 = vrot.lane.b32.xlu0 %v376, 96
        %v498 = vpop.permute.xlu0 %497
        %v499 = vsel %vm390, %v376, 0
        %v501 = vsel %vm390, %v498, 0
        %503 = vmatpush.xpose.msra.mxu0 0.0
        %504 = vmatpush.xpose.msra.mxu0 0.0
        %505 = vmatpush.xpose.msra.mxu0 0.0
        %506 = vmatpush.xpose.msra.mxu0 0.0
        %507 = vmatpush.xpose.msra.mxu0 0.0
        %508 = vmatpush.xpose.msra.mxu0 0.0
        %509 = vmatpush.xpose.msra.mxu0 0.0
        %510 = vmatpush.xpose.msra.mxu0 0.0
        %511 = vmatpush.xpose.msra.mxu0 0.0
        %512 = vmatpush.xpose.msra.mxu0 0.0
        %513 = vmatpush.xpose.msra.mxu0 0.0
        %514 = vmatpush.xpose.msra.mxu0 0.0
        %515 = vmatpush.xpose.msra.mxu0 0.0
        %516 = vmatpush.xpose.msra.mxu0 0.0
        %517 = vmatpush.xpose.msra.mxu0 0.0
        %518 = vmatpush.xpose.msra.mxu0 %v501
        %519 = vmatmul.f32.gmra.mxu0 %v499
        %v520 = vpop.f32.mrf.mxu0
        %v521 = vadd.f32 0.0, %v520
        %522 = vdwg.mxu0
        %524 = vrot.lane.b32.xlu0 %v379, 96
        %v525 = vpop.permute.xlu0 %524
        %v526 = vsel %vm390, %v379, 0
        %v528 = vsel %vm390, %v525, 0
        %530 = vmatpush.xpose.msra.mxu0 0.0
        %531 = vmatpush.xpose.msra.mxu0 0.0
        %532 = vmatpush.xpose.msra.mxu0 0.0
        %533 = vmatpush.xpose.msra.mxu0 0.0
        %534 = vmatpush.xpose.msra.mxu0 0.0
        %535 = vmatpush.xpose.msra.mxu0 0.0
        %536 = vmatpush.xpose.msra.mxu0 0.0
        %537 = vmatpush.xpose.msra.mxu0 0.0
        %538 = vmatpush.xpose.msra.mxu0 0.0
        %539 = vmatpush.xpose.msra.mxu0 0.0
        %540 = vmatpush.xpose.msra.mxu0 0.0
        %541 = vmatpush.xpose.msra.mxu0 0.0
        %542 = vmatpush.xpose.msra.mxu0 0.0
        %543 = vmatpush.xpose.msra.mxu0 0.0
        %544 = vmatpush.xpose.msra.mxu0 0.0
        %545 = vmatpush.xpose.msra.mxu0 %v528
        %546 = vmatmul.f32.gmra.mxu0 %v526
        %v547 = vpop.f32.mrf.mxu0
        %v548 = vadd.f32 0.0, %v547
        %549 = vdwg.mxu0
        %551 = vrot.lane.b32.xlu0 %v382, 96
        %v552 = vpop.permute.xlu0 %551
        %v553 = vsel %vm390, %v382, 0
        %v555 = vsel %vm390, %v552, 0
        %557 = vmatpush.xpose.msra.mxu0 0.0
        %558 = vmatpush.xpose.msra.mxu0 0.0
        %559 = vmatpush.xpose.msra.mxu0 0.0
        %560 = vmatpush.xpose.msra.mxu0 0.0
        %561 = vmatpush.xpose.msra.mxu0 0.0
        %562 = vmatpush.xpose.msra.mxu0 0.0
        %563 = vmatpush.xpose.msra.mxu0 0.0
        %564 = vmatpush.xpose.msra.mxu0 0.0
        %565 = vmatpush.xpose.msra.mxu0 0.0
        %566 = vmatpush.xpose.msra.mxu0 0.0
        %567 = vmatpush.xpose.msra.mxu0 0.0
        %568 = vmatpush.xpose.msra.mxu0 0.0
        %569 = vmatpush.xpose.msra.mxu0 0.0
        %570 = vmatpush.xpose.msra.mxu0 0.0
        %571 = vmatpush.xpose.msra.mxu0 0.0
        %572 = vmatpush.xpose.msra.mxu0 %v555
        %573 = vmatmul.f32.gmra.mxu0 %v553
        %v574 = vpop.f32.mrf.mxu0
        %v575 = vadd.f32 0.0, %v574
        %576 = vdwg.mxu0
        %578 = vrot.lane.b32.xlu0 %v385, 96
        %v579 = vpop.permute.xlu0 %578
        %v580 = vsel %vm390, %v385, 0
        %v582 = vsel %vm390, %v579, 0
        %584 = vmatpush.xpose.msra.mxu0 0.0
        %585 = vmatpush.xpose.msra.mxu0 0.0
        %586 = vmatpush.xpose.msra.mxu0 0.0
        %587 = vmatpush.xpose.msra.mxu0 0.0
        %588 = vmatpush.xpose.msra.mxu0 0.0
        %589 = vmatpush.xpose.msra.mxu0 0.0
        %590 = vmatpush.xpose.msra.mxu0 0.0
        %591 = vmatpush.xpose.msra.mxu0 0.0
        %592 = vmatpush.xpose.msra.mxu0 0.0
        %593 = vmatpush.xpose.msra.mxu0 0.0
        %594 = vmatpush.xpose.msra.mxu0 0.0
        %595 = vmatpush.xpose.msra.mxu0 0.0
        %596 = vmatpush.xpose.msra.mxu0 0.0
        %597 = vmatpush.xpose.msra.mxu0 0.0
        %598 = vmatpush.xpose.msra.mxu0 0.0
        %599 = vmatpush.xpose.msra.mxu0 %v582
        %600 = vmatmul.f32.gmra.mxu0 %v580
        %v601 = vpop.f32.mrf.mxu0
        %v602 = vadd.f32 0.0, %v601
        %603 = vdwg.mxu0
        %v604 = vld [vmem:[%s306] sm:$0xff]
        %v605 = vrot.slane %v604, 1
        %v606 = vrot.slane %v604, 2
        %v607 = vrot.slane %v604, 3
        %v608 = vrot.slane %v604, 4
        %v609 = vrot.slane %v604, 5
        %v610 = vrot.slane %v604, 6
        %v611 = vrot.slane %v604, 7
        %v612 = vlaneseq
        %v613 = vand.u32 %v612, 127
        %614 = vset.pattern.permute.xlu0 0
        %615 = vperm.xlu0 %614, %v604
        %v616 = vpop.permute.xlu0 %615
        %v617 = vperm.slane %v616, 0
        %618 = vset.pattern.permute.xlu0 0
        %619 = vperm.xlu0 %618, %v605
        %v620 = vpop.permute.xlu0 %619
        %v621 = vperm.slane %v620, 0
        %622 = vset.pattern.permute.xlu0 0
        %623 = vperm.xlu0 %622, %v606
        %v624 = vpop.permute.xlu0 %623
        %v625 = vperm.slane %v624, 0
        %626 = vset.pattern.permute.xlu0 0
        %627 = vperm.xlu0 %626, %v607
        %v628 = vpop.permute.xlu0 %627
        %v629 = vperm.slane %v628, 0
        %630 = vset.pattern.permute.xlu0 0
        %631 = vperm.xlu0 %630, %v608
        %v632 = vpop.permute.xlu0 %631
        %v633 = vperm.slane %v632, 0
        %634 = vset.pattern.permute.xlu0 0
        %635 = vperm.xlu0 %634, %v609
        %v636 = vpop.permute.xlu0 %635
        %v637 = vperm.slane %v636, 0
        %638 = vset.pattern.permute.xlu0 0
        %639 = vperm.xlu0 %638, %v610
        %v640 = vpop.permute.xlu0 %639
        %v641 = vperm.slane %v640, 0
        %642 = vset.pattern.permute.xlu0 0
        %643 = vperm.xlu0 %642, %v611
        %v644 = vpop.permute.xlu0 %643
        %v645 = vperm.slane %v644, 0
        %vm646 = vcmp.lt.s32.totalorder %v613, %v617
        %vm647 = vcmp.lt.s32.totalorder %v613, %v621
        %vm648 = vcmp.lt.s32.totalorder %v613, %v625
        %vm649 = vcmp.lt.s32.totalorder %v613, %v629
        %vm650 = vcmp.lt.s32.totalorder %v613, %v633
        %vm651 = vcmp.lt.s32.totalorder %v613, %v637
        %vm652 = vcmp.lt.s32.totalorder %v613, %v641
        %vm653 = vcmp.lt.s32.totalorder %v613, %v645
        %v654 = vsel %vm646, 1, 0
        %v655 = vsel %vm647, 1, 0
        %v656 = vsel %vm648, 1, 0
        %v657 = vsel %vm649, 1, 0
        %v658 = vsel %vm650, 1, 0
        %v659 = vsel %vm651, 1, 0
        %v660 = vsel %vm652, 1, 0
        %v661 = vsel %vm653, 1, 0
        %vm662 = vcmp.eq.s32.totalorder %v654, 1
        %vm663 = vcmp.eq.s32.totalorder %v655, 1
        %vm664 = vcmp.eq.s32.totalorder %v656, 1
        %vm665 = vcmp.eq.s32.totalorder %v657, 1
        %vm666 = vcmp.eq.s32.totalorder %v658, 1
        %vm667 = vcmp.eq.s32.totalorder %v659, 1
        %vm668 = vcmp.eq.s32.totalorder %v660, 1
        %vm669 = vcmp.eq.s32.totalorder %v661, 1
        %v670 = vsel %vm662, %v413, -1e+30
        %v671 = vsel %vm663, %v440, -1e+30
        %v672 = vsel %vm664, %v467, -1e+30
        %v673 = vsel %vm665, %v494, -1e+30
        %v674 = vsel %vm666, %v521, -1e+30
        %v675 = vsel %vm667, %v548, -1e+30
        %v676 = vsel %vm668, %v575, -1e+30
        %v677 = vsel %vm669, %v602, -1e+30
        %vm678 = vcmask 64512
        %v679 = vsel %vm678, %v670, -inf
        %680 = vmax.xlane.f32.xlu0 %v679
        %v681 = vpop.xlane.xlu0 %680
        %v682 = vsel %vm678, %v671, -inf
        %683 = vmax.xlane.f32.xlu0 %v682
        %v684 = vpop.xlane.xlu0 %683
        %v685 = vsel %vm678, %v672, -inf
        %686 = vmax.xlane.f32.xlu0 %v685
        %v687 = vpop.xlane.xlu0 %686
        %v688 = vsel %vm678, %v673, -inf
        %689 = vmax.xlane.f32.xlu0 %v688
        %v690 = vpop.xlane.xlu0 %689
        %v691 = vsel %vm678, %v674, -inf
        %692 = vmax.xlane.f32.xlu0 %v691
        %v693 = vpop.xlane.xlu0 %692
        %v694 = vsel %vm678, %v675, -inf
        %695 = vmax.xlane.f32.xlu0 %v694
        %v696 = vpop.xlane.xlu0 %695
        %v697 = vsel %vm678, %v676, -inf
        %698 = vmax.xlane.f32.xlu0 %v697
        %v699 = vpop.xlane.xlu0 %698
        %v700 = vsel %vm678, %v677, -inf
        %701 = vmax.xlane.f32.xlu0 %v700
        %v702 = vpop.xlane.xlu0 %701
        %v703 = vsub.f32 %v670, %v681
        %v704 = vsub.f32 %v671, %v684
        %v705 = vsub.f32 %v672, %v687
        %v706 = vsub.f32 %v673, %v690
        %v707 = vsub.f32 %v674, %v693
        %v708 = vsub.f32 %v675, %v696
        %v709 = vsub.f32 %v676, %v699
        %v710 = vsub.f32 %v677, %v702
        %v711 = vmul.f32 %v703, 1.442695
        %v712 = vpow.pop %v711
        %v713 = vmul.f32 %v704, 1.442695
        %v714 = vpow.pop %v713
        %v715 = vmul.f32 %v705, 1.442695
        %v716 = vpow.pop %v715
        %v717 = vmul.f32 %v706, 1.442695
        %v718 = vpow.pop %v717
        %v719 = vmul.f32 %v707, 1.442695
        %v720 = vpow.pop %v719
        %v721 = vmul.f32 %v708, 1.442695
        %v722 = vpow.pop %v721
        %v723 = vmul.f32 %v709, 1.442695
        %v724 = vpow.pop %v723
        %v725 = vmul.f32 %v710, 1.442695
        %v726 = vpow.pop %v725
        %v727 = vsel %vm678, %v712, 0.0
        %728 = vadd.xlane.f32.xlu0 %v727
        %v729 = vpop.xlane.xlu0 %728
        %v730 = vsel %vm678, %v714, 0.0
        %731 = vadd.xlane.f32.xlu0 %v730
        %v732 = vpop.xlane.xlu0 %731
        %v733 = vsel %vm678, %v716, 0.0
        %734 = vadd.xlane.f32.xlu0 %v733
        %v735 = vpop.xlane.xlu0 %734
        %v736 = vsel %vm678, %v718, 0.0
        %737 = vadd.xlane.f32.xlu0 %v736
        %v738 = vpop.xlane.xlu0 %737
        %v739 = vsel %vm678, %v720, 0.0
        %740 = vadd.xlane.f32.xlu0 %v739
        %v741 = vpop.xlane.xlu0 %740
        %v742 = vsel %vm678, %v722, 0.0
        %743 = vadd.xlane.f32.xlu0 %v742
        %v744 = vpop.xlane.xlu0 %743
        %v745 = vsel %vm678, %v724, 0.0
        %746 = vadd.xlane.f32.xlu0 %v745
        %v747 = vpop.xlane.xlu0 %746
        %v748 = vsel %vm678, %v726, 0.0
        %749 = vadd.xlane.f32.xlu0 %v748
        %v750 = vpop.xlane.xlu0 %749
        %v751 = vrcp.pop %v729
        %v752 = vrcp.pop %v732
        %v753 = vrcp.pop %v735
        %v754 = vrcp.pop %v738
        %v755 = vrcp.pop %v741
        %v756 = vrcp.pop %v744
        %v757 = vrcp.pop %v747
        %v758 = vrcp.pop %v750
        %v759 = vmul.f32 %v712, %v751
        %v760 = vmul.f32 %v714, %v752
        %v761 = vmul.f32 %v716, %v753
        %v762 = vmul.f32 %v718, %v754
        %v763 = vmul.f32 %v720, %v755
        %v764 = vmul.f32 %v722, %v756
        %v765 = vmul.f32 %v724, %v757
        %v766 = vmul.f32 %v726, %v758
        %767 = vrot.lane.b32.xlu0 %v364, 64
        %v768 = vpop.permute.xlu0 %767
        %v771 = vsel %vm678, %v759, 0
        %773 = vmatpush.msra.mxu0 0.0
        %774 = vmatpush.msra.mxu0 0.0
        %775 = vmatpush.msra.mxu0 0.0
        %776 = vmatpush.msra.mxu0 0.0
        %777 = vmatpush.msra.mxu0 0.0
        %778 = vmatpush.msra.mxu0 0.0
        %779 = vmatpush.msra.mxu0 0.0
        %780 = vmatpush.msra.mxu0 0.0
        %781 = vmatpush.msra.mxu0 0.0
        %782 = vmatpush.msra.mxu0 0.0
        %783 = vmatpush.msra.mxu0 0.0
        %784 = vmatpush.msra.mxu0 0.0
        %785 = vmatpush.msra.mxu0 0.0
        %786 = vmatpush.msra.mxu0 0.0
        %787 = vmatpush.msra.mxu0 0.0
        %788 = vmatpush.msra.mxu0 %v768
        %789 = vmatmul.f32.gmra.mxu0 %v771
        %v790 = vpop.f32.mrf.mxu0
        %v791 = vadd.f32 0.0, %v790
        %792 = vdwg.mxu0
        %793 = vrot.lane.b32.xlu0 %v367, 64
        %v794 = vpop.permute.xlu0 %793
        %v797 = vsel %vm678, %v760, 0
        %799 = vmatpush.msra.mxu0 0.0
        %800 = vmatpush.msra.mxu0 0.0
        %801 = vmatpush.msra.mxu0 0.0
        %802 = vmatpush.msra.mxu0 0.0
        %803 = vmatpush.msra.mxu0 0.0
        %804 = vmatpush.msra.mxu0 0.0
        %805 = vmatpush.msra.mxu0 0.0
        %806 = vmatpush.msra.mxu0 0.0
        %807 = vmatpush.msra.mxu0 0.0
        %808 = vmatpush.msra.mxu0 0.0
        %809 = vmatpush.msra.mxu0 0.0
        %810 = vmatpush.msra.mxu0 0.0
        %811 = vmatpush.msra.mxu0 0.0
        %812 = vmatpush.msra.mxu0 0.0
        %813 = vmatpush.msra.mxu0 0.0
        %814 = vmatpush.msra.mxu0 %v794
        %815 = vmatmul.f32.gmra.mxu0 %v797
        %v816 = vpop.f32.mrf.mxu0
        %v817 = vadd.f32 0.0, %v816
        %818 = vdwg.mxu0
        %819 = vrot.lane.b32.xlu0 %v370, 64
        %v820 = vpop.permute.xlu0 %819
        %v823 = vsel %vm678, %v761, 0
        %825 = vmatpush.msra.mxu0 0.0
        %826 = vmatpush.msra.mxu0 0.0
        %827 = vmatpush.msra.mxu0 0.0
        %828 = vmatpush.msra.mxu0 0.0
        %829 = vmatpush.msra.mxu0 0.0
        %830 = vmatpush.msra.mxu0 0.0
        %831 = vmatpush.msra.mxu0 0.0
        %832 = vmatpush.msra.mxu0 0.0
        %833 = vmatpush.msra.mxu0 0.0
        %834 = vmatpush.msra.mxu0 0.0
        %835 = vmatpush.msra.mxu0 0.0
        %836 = vmatpush.msra.mxu0 0.0
        %837 = vmatpush.msra.mxu0 0.0
        %838 = vmatpush.msra.mxu0 0.0
        %839 = vmatpush.msra.mxu0 0.0
        %840 = vmatpush.msra.mxu0 %v820
        %841 = vmatmul.f32.gmra.mxu0 %v823
        %v842 = vpop.f32.mrf.mxu0
        %v843 = vadd.f32 0.0, %v842
        %844 = vdwg.mxu0
        %845 = vrot.lane.b32.xlu0 %v373, 64
        %v846 = vpop.permute.xlu0 %845
        %v849 = vsel %vm678, %v762, 0
        %851 = vmatpush.msra.mxu0 0.0
        %852 = vmatpush.msra.mxu0 0.0
        %853 = vmatpush.msra.mxu0 0.0
        %854 = vmatpush.msra.mxu0 0.0
        %855 = vmatpush.msra.mxu0 0.0
        %856 = vmatpush.msra.mxu0 0.0
        %857 = vmatpush.msra.mxu0 0.0
        %858 = vmatpush.msra.mxu0 0.0
        %859 = vmatpush.msra.mxu0 0.0
        %860 = vmatpush.msra.mxu0 0.0
        %861 = vmatpush.msra.mxu0 0.0
        %862 = vmatpush.msra.mxu0 0.0
        %863 = vmatpush.msra.mxu0 0.0
        %864 = vmatpush.msra.mxu0 0.0
        %865 = vmatpush.msra.mxu0 0.0
        %866 = vmatpush.msra.mxu0 %v846
        %867 = vmatmul.f32.gmra.mxu0 %v849
        %v868 = vpop.f32.mrf.mxu0
        %v869 = vadd.f32 0.0, %v868
        %870 = vdwg.mxu0
        %871 = vrot.lane.b32.xlu0 %v376, 64
        %v872 = vpop.permute.xlu0 %871
        %v875 = vsel %vm678, %v763, 0
        %877 = vmatpush.msra.mxu0 0.0
        %878 = vmatpush.msra.mxu0 0.0
        %879 = vmatpush.msra.mxu0 0.0
        %880 = vmatpush.msra.mxu0 0.0
        %881 = vmatpush.msra.mxu0 0.0
        %882 = vmatpush.msra.mxu0 0.0
        %883 = vmatpush.msra.mxu0 0.0
        %884 = vmatpush.msra.mxu0 0.0
        %885 = vmatpush.msra.mxu0 0.0
        %886 = vmatpush.msra.mxu0 0.0
        %887 = vmatpush.msra.mxu0 0.0
        %888 = vmatpush.msra.mxu0 0.0
        %889 = vmatpush.msra.mxu0 0.0
        %890 = vmatpush.msra.mxu0 0.0
        %891 = vmatpush.msra.mxu0 0.0
        %892 = vmatpush.msra.mxu0 %v872
        %893 = vmatmul.f32.gmra.mxu0 %v875
        %v894 = vpop.f32.mrf.mxu0
        %v895 = vadd.f32 0.0, %v894
        %896 = vdwg.mxu0
        %897 = vrot.lane.b32.xlu0 %v379, 64
        %v898 = vpop.permute.xlu0 %897
        %v901 = vsel %vm678, %v764, 0
        %903 = vmatpush.msra.mxu0 0.0
        %904 = vmatpush.msra.mxu0 0.0
        %905 = vmatpush.msra.mxu0 0.0
        %906 = vmatpush.msra.mxu0 0.0
        %907 = vmatpush.msra.mxu0 0.0
        %908 = vmatpush.msra.mxu0 0.0
        %909 = vmatpush.msra.mxu0 0.0
        %910 = vmatpush.msra.mxu0 0.0
        %911 = vmatpush.msra.mxu0 0.0
        %912 = vmatpush.msra.mxu0 0.0
        %913 = vmatpush.msra.mxu0 0.0
        %914 = vmatpush.msra.mxu0 0.0
        %915 = vmatpush.msra.mxu0 0.0
        %916 = vmatpush.msra.mxu0 0.0
        %917 = vmatpush.msra.mxu0 0.0
        %918 = vmatpush.msra.mxu0 %v898
        %919 = vmatmul.f32.gmra.mxu0 %v901
        %v920 = vpop.f32.mrf.mxu0
        %v921 = vadd.f32 0.0, %v920
        %922 = vdwg.mxu0
        %923 = vrot.lane.b32.xlu0 %v382, 64
        %v924 = vpop.permute.xlu0 %923
        %v927 = vsel %vm678, %v765, 0
        %929 = vmatpush.msra.mxu0 0.0
        %930 = vmatpush.msra.mxu0 0.0
        %931 = vmatpush.msra.mxu0 0.0
        %932 = vmatpush.msra.mxu0 0.0
        %933 = vmatpush.msra.mxu0 0.0
        %934 = vmatpush.msra.mxu0 0.0
        %935 = vmatpush.msra.mxu0 0.0
        %936 = vmatpush.msra.mxu0 0.0
        %937 = vmatpush.msra.mxu0 0.0
        %938 = vmatpush.msra.mxu0 0.0
        %939 = vmatpush.msra.mxu0 0.0
        %940 = vmatpush.msra.mxu0 0.0
        %941 = vmatpush.msra.mxu0 0.0
        %942 = vmatpush.msra.mxu0 0.0
        %943 = vmatpush.msra.mxu0 0.0
        %944 = vmatpush.msra.mxu0 %v924
        %945 = vmatmul.f32.gmra.mxu0 %v927
        %v946 = vpop.f32.mrf.mxu0
        %v947 = vadd.f32 0.0, %v946
        %948 = vdwg.mxu0
        %949 = vrot.lane.b32.xlu0 %v385, 64
        %v950 = vpop.permute.xlu0 %949
        %v953 = vsel %vm678, %v766, 0
        %955 = vmatpush.msra.mxu0 0.0
        %956 = vmatpush.msra.mxu0 0.0
        %957 = vmatpush.msra.mxu0 0.0
        %958 = vmatpush.msra.mxu0 0.0
        %959 = vmatpush.msra.mxu0 0.0
        %960 = vmatpush.msra.mxu0 0.0
        %961 = vmatpush.msra.mxu0 0.0
        %962 = vmatpush.msra.mxu0 0.0
        %963 = vmatpush.msra.mxu0 0.0
        %964 = vmatpush.msra.mxu0 0.0
        %965 = vmatpush.msra.mxu0 0.0
        %966 = vmatpush.msra.mxu0 0.0
        %967 = vmatpush.msra.mxu0 0.0
        %968 = vmatpush.msra.mxu0 0.0
        %969 = vmatpush.msra.mxu0 0.0
        %970 = vmatpush.msra.mxu0 %v950
        %971 = vmatmul.f32.gmra.mxu0 %v953
        %v972 = vpop.f32.mrf.mxu0
        %v973 = vadd.f32 0.0, %v972
        %974 = vdwg.mxu0
        %v975 = vld [vmem:[#allocation5] sm:$0xff]
        %v976 = vld [vmem:[#allocation5 + $0x8] sm:$0xff]
        %v977 = vld [vmem:[#allocation5 + $0x10] sm:$0xff]
        %v978 = vld [vmem:[#allocation5 + $0x18] sm:$0xff]
        %v979 = vld [vmem:[%s5] sm:$0x1]
        %v981 = vperm.slane %v979, 0
        %v984 = vsel %vm390, %v791, 0
        %v987 = vsel %vm390, %v817, 0
        %v990 = vsel %vm390, %v843, 0
        %v993 = vsel %vm390, %v869, 0
        %v996 = vsel %vm390, %v895, 0
        %v999 = vsel %vm390, %v921, 0
        %v1002 = vsel %vm390, %v947, 0
        %v1005 = vsel %vm390, %v973, 0
        %1007 = vmatpush.msra.mxu0 0.0
        %1008 = vmatpush.msra.mxu0 0.0
        %1009 = vmatpush.msra.mxu0 0.0
        %1010 = vmatpush.msra.mxu0 0.0
        %1011 = vmatpush.msra.mxu0 0.0
        %1012 = vmatpush.msra.mxu0 0.0
        %1013 = vmatpush.msra.mxu0 0.0
        %1014 = vmatpush.msra.mxu0 0.0
        %1015 = vmatpush.msra.mxu0 0.0
        %1016 = vmatpush.msra.mxu0 0.0
        %1017 = vmatpush.msra.mxu0 0.0
        %1018 = vmatpush.msra.mxu0 0.0
        %1019 = vmatpush.msra.mxu0 %v978
        %1020 = vmatpush.msra.mxu0 %v977
        %1021 = vmatpush.msra.mxu0 %v976
        %1022 = vmatpush.msra.mxu0 %v975
        %1023 = vmatmul.f32.gmra.mxu0 %v984
        %v1024 = vpop.f32.mrf.mxu0
        %v1025 = vadd.f32 %v981, %v1024
        %1026 = vmatmul.f32.gmra.mxu0 %v987
        %v1027 = vpop.f32.mrf.mxu0
        %v1028 = vadd.f32 %v981, %v1027
        %1029 = vmatmul.f32.gmra.mxu0 %v990
        %v1030 = vpop.f32.mrf.mxu0
        %v1031 = vadd.f32 %v981, %v1030
        %1032 = vmatmul.f32.gmra.mxu0 %v993
        %v1033 = vpop.f32.mrf.mxu0
        %v1034 = vadd.f32 %v981, %v1033
        %1035 = vmatmul.f32.gmra.mxu0 %v996
        %v1036 = vpop.f32.mrf.mxu0
        %v1037 = vadd.f32 %v981, %v1036
        %1038 = vmatmul.f32.gmra.mxu0 %v999
        %v1039 = vpop.f32.mrf.mxu0
        %v1040 = vadd.f32 %v981, %v1039
        %1041 = vmatmul.f32.gmra.mxu0 %v1002
        %v1042 = vpop.f32.mrf.mxu0
        %v1043 = vadd.f32 %v981, %v1042
        %1044 = vmatmul.f32.gmra.mxu0 %v1005
        %v1045 = vpop.f32.mrf.mxu0
        %v1046 = vadd.f32 %v981, %v1045
        %1047 = vdwg.mxu0
        %v1048 = vlaneseq
        %v1049 = vshrl.u32 %v1048, 7
        %v1050 = vperm.slane %v604, 0
        %v1051 = vperm.slane %v605, 0
        %v1052 = vperm.slane %v606, 0
        %v1053 = vperm.slane %v607, 0
        %v1054 = vperm.slane %v608, 0
        %v1055 = vperm.slane %v609, 0
        %v1056 = vperm.slane %v610, 0
        %v1057 = vperm.slane %v611, 0
        %vm1058 = vcmp.lt.s32.totalorder %v1049, %v1050
        %vm1059 = vcmp.lt.s32.totalorder %v1049, %v1051
        %vm1060 = vcmp.lt.s32.totalorder %v1049, %v1052
        %vm1061 = vcmp.lt.s32.totalorder %v1049, %v1053
        %vm1062 = vcmp.lt.s32.totalorder %v1049, %v1054
        %vm1063 = vcmp.lt.s32.totalorder %v1049, %v1055
        %vm1064 = vcmp.lt.s32.totalorder %v1049, %v1056
        %vm1065 = vcmp.lt.s32.totalorder %v1049, %v1057
        %v1066 = vsel %vm1058, 1, 0
        %v1067 = vsel %vm1059, 1, 0
        %v1068 = vsel %vm1060, 1, 0
        %v1069 = vsel %vm1061, 1, 0
        %v1070 = vsel %vm1062, 1, 0
        %v1071 = vsel %vm1063, 1, 0
        %v1072 = vsel %vm1064, 1, 0
        %v1073 = vsel %vm1065, 1, 0
        %1074 = vset.pattern.permute.xlu0 0
        %1075 = vperm.xlu0 %1074, %v1066
        %v1076 = vpop.permute.xlu0 %1075
        %1077 = vset.pattern.permute.xlu0 0
        %1078 = vperm.xlu0 %1077, %v1067
        %v1079 = vpop.permute.xlu0 %1078
        %1080 = vset.pattern.permute.xlu0 0
        %1081 = vperm.xlu0 %1080, %v1068
        %v1082 = vpop.permute.xlu0 %1081
        %1083 = vset.pattern.permute.xlu0 0
        %1084 = vperm.xlu0 %1083, %v1069
        %v1085 = vpop.permute.xlu0 %1084
        %1086 = vset.pattern.permute.xlu0 0
        %1087 = vperm.xlu0 %1086, %v1070
        %v1088 = vpop.permute.xlu0 %1087
        %1089 = vset.pattern.permute.xlu0 0
        %1090 = vperm.xlu0 %1089, %v1071
        %v1091 = vpop.permute.xlu0 %1090
        %1092 = vset.pattern.permute.xlu0 0
        %1093 = vperm.xlu0 %1092, %v1072
        %v1094 = vpop.permute.xlu0 %1093
        %1095 = vset.pattern.permute.xlu0 0
        %1096 = vperm.xlu0 %1095, %v1073
        %v1097 = vpop.permute.xlu0 %1096
        %vm1098 = vcmp.eq.s32.totalorder %v1076, 1
        %vm1099 = vcmp.eq.s32.totalorder %v1079, 1
        %vm1100 = vcmp.eq.s32.totalorder %v1082, 1
        %vm1101 = vcmp.eq.s32.totalorder %v1085, 1
        %vm1102 = vcmp.eq.s32.totalorder %v1088, 1
        %vm1103 = vcmp.eq.s32.totalorder %v1091, 1
        %vm1104 = vcmp.eq.s32.totalorder %v1094, 1
        %vm1105 = vcmp.eq.s32.totalorder %v1097, 1
        %v1106 = vsel %vm1098, %v1025, -1e+30
        %v1107 = vsel %vm1099, %v1028, -1e+30
        %v1108 = vsel %vm1100, %v1031, -1e+30
        %v1109 = vsel %vm1101, %v1034, -1e+30
        %v1110 = vsel %vm1102, %v1037, -1e+30
        %v1111 = vsel %vm1103, %v1040, -1e+30
        %v1112 = vsel %vm1104, %v1043, -1e+30
        %v1113 = vsel %vm1105, %v1046, -1e+30
        %v1114 = vsel %vm390, %v1106, -inf
        %v1115 = vrot.slane %v1114, 4
        %v1116 = vmax.f32 %v1114, %v1115
        %v1117 = vrot.slane %v1116, 2
        %v1118 = vmax.f32 %v1116, %v1117
        %v1119 = vrot.slane %v1118, 1
        %v1120 = vmax.f32 %v1118, %v1119
        %v1121 = vsel %vm390, %v1107, -inf
        %v1122 = vrot.slane %v1121, 4
        %v1123 = vmax.f32 %v1121, %v1122
        %v1124 = vrot.slane %v1123, 2
        %v1125 = vmax.f32 %v1123, %v1124
        %v1126 = vrot.slane %v1125, 1
        %v1127 = vmax.f32 %v1125, %v1126
        %v1128 = vsel %vm390, %v1108, -inf
        %v1129 = vrot.slane %v1128, 4
        %v1130 = vmax.f32 %v1128, %v1129
        %v1131 = vrot.slane %v1130, 2
        %v1132 = vmax.f32 %v1130, %v1131
        %v1133 = vrot.slane %v1132, 1
        %v1134 = vmax.f32 %v1132, %v1133
        %v1135 = vsel %vm390, %v1109, -inf
        %v1136 = vrot.slane %v1135, 4
        %v1137 = vmax.f32 %v1135, %v1136
        %v1138 = vrot.slane %v1137, 2
        %v1139 = vmax.f32 %v1137, %v1138
        %v1140 = vrot.slane %v1139, 1
        %v1141 = vmax.f32 %v1139, %v1140
        %v1142 = vsel %vm390, %v1110, -inf
        %v1143 = vrot.slane %v1142, 4
        %v1144 = vmax.f32 %v1142, %v1143
        %v1145 = vrot.slane %v1144, 2
        %v1146 = vmax.f32 %v1144, %v1145
        %v1147 = vrot.slane %v1146, 1
        %v1148 = vmax.f32 %v1146, %v1147
        %v1149 = vsel %vm390, %v1111, -inf
        %v1150 = vrot.slane %v1149, 4
        %v1151 = vmax.f32 %v1149, %v1150
        %v1152 = vrot.slane %v1151, 2
        %v1153 = vmax.f32 %v1151, %v1152
        %v1154 = vrot.slane %v1153, 1
        %v1155 = vmax.f32 %v1153, %v1154
        %v1156 = vsel %vm390, %v1112, -inf
        %v1157 = vrot.slane %v1156, 4
        %v1158 = vmax.f32 %v1156, %v1157
        %v1159 = vrot.slane %v1158, 2
        %v1160 = vmax.f32 %v1158, %v1159
        %v1161 = vrot.slane %v1160, 1
        %v1162 = vmax.f32 %v1160, %v1161
        %v1163 = vsel %vm390, %v1113, -inf
        %v1164 = vrot.slane %v1163, 4
        %v1165 = vmax.f32 %v1163, %v1164
        %v1166 = vrot.slane %v1165, 2
        %v1167 = vmax.f32 %v1165, %v1166
        %v1168 = vrot.slane %v1167, 1
        %v1169 = vmax.f32 %v1167, %v1168
        %vm1178 = vcmask 1041409
        %v1179 = vsel %vm1178, %v1127, %v1120
        %vm1180 = vcmask 1042434
        %v1181 = vsel %vm1180, %v1134, %v1179
        %vm1182 = vcmask 1043459
        %v1183 = vsel %vm1182, %v1141, %v1181
        %vm1184 = vcmask 1044484
        %v1185 = vsel %vm1184, %v1148, %v1183
        %vm1186 = vcmask 1045509
        %v1187 = vsel %vm1186, %v1155, %v1185
        %vm1188 = vcmask 1046534
        %v1189 = vsel %vm1188, %v1162, %v1187
        %vm1190 = vcmask 1047559
        %v1191 = vsel %vm1190, %v1169, %v1189
        %1193 = vst.msk [vmem:[%s301] sm:$0xff] %vm390, %v1191
        %s1194 = sand.u32 %s168, 1
        %s1195 = scalar_lea.sflag [#allocation4], %s1194
        %s1196 = sand.u32 %s168, 1
        %s1197 = smul.addr %s1196, 8
        %s1198 = scalar_lea.vmem [#allocation7], %s1197
        // Predicated region
        $region53: #{tpu_custom_call.1} parent=43 // pred_check
          %p1199 = pneg %p178
        $region54: #{tpu_custom_call.1} parent=43 // pred_check_branch
          %1201 = sbr.rel (%p1199) target = $region56
        $region55: #{tpu_custom_call.1} parent=43 // pred_region
          %1203 = vsyncadd %s1195, 0
          %s1204 = smul.addr %s24, 8
          %s1205 = scalar_lea.hbm %s6, %s1204
          %s1207 = sshll.u32 %s1198, 4
          %s1208 = int_to_ptr.vmem [resolvable:$true] %s1207
          %s1209 = sshll.u32 %s1205, 4
          %s1210 = int_to_ptr.hbm [resolvable:$true] %s1209
          %1212 = dma.vmem_to_hbm [thread:$0]  %s1208, 128, %s1210, %s1195
        $region56: #{tpu_custom_call.1} parent=43 // pred_fallthru
          _
      $region44: #{tpu_custom_call.1} parent=5 // pred_fallthru
        _
      %p1213 = scmp.le.s32.totalorder 2, %s19
      // Predicated region
      $region57: #{tpu_custom_call.1} parent=5 // pred_check
        %p1214 = pneg %p1213
      $region58: #{tpu_custom_call.1} parent=5 // pred_check_branch
        %1216 = sbr.rel (%p1214) target = $region60
      $region59: #{tpu_custom_call.1} parent=5 // pred_region
        %s1217 = ssub.s32 %s19, 2
        // Predicated region
        $region61: #{tpu_custom_call.1} parent=59 // pred_check
          %p1218 = pneg %p184
        $region62: #{tpu_custom_call.1} parent=59 // pred_check_branch
          %1220 = sbr.rel (%p1218) target = $region64
        $region63: #{tpu_custom_call.1} parent=59 // pred_region
          %s1221 = sand.u32 %s169, 1
          %s1222 = scalar_lea.sflag [#allocation4], %s1221
          %s1223 = sand.u32 %s169, 1
          %s1224 = smul.addr %s1223, 8
          %s1225 = scalar_lea.vmem [#allocation7], %s1224
          %1227 = dma.done %s1222, 128
        $region64: #{tpu_custom_call.1} parent=59 // pred_fallthru
          _
      $region60: #{tpu_custom_call.1} parent=5 // pred_fallthru
        _
    $region6: #{tpu_custom_call.1} parent=1 // loop_footer
      %s23 = sadd.s32 1, %s19
    $region7: #{tpu_custom_call.1} parent=1 // loop_footer_branch
      %18 = sbr.rel target = $region3
    $region8: #{tpu_custom_call.1} parent=1 // loop_exit
      _
    %1228 = vsyncpa [#allocation3], 1
    %s1229 = scalar_lea.sflag [#allocation3], 1
    %1230 = vsyncpa %s1229, 1
    %1231 = vsyncpa [#allocation6], 1
    %1232 = vsyncpa [#allocation4], 1
    %s1233 = scalar_lea.sflag [#allocation4], 1
    %1234 = vsyncpa %s1233, 1

</llo_original>
